<compile_context>
chip_gen: v7x
topology: tpu7x:2x2x1
jax: 0.10.0
libtpu: 0.0.40
codegen_flags: <defaults>
</compile_context>

<pallas_src>
import jax
import jax.numpy as jnp
from jax.experimental import pallas as pl
from jax.experimental.pallas import tpu as pltpu

IN_DIM = 2
HIDDEN_DIM = 15
OUT_DIM = 1

LANE = 128            # padded hidden width inside the kernel (VMEM only)
MAX_BATCH_TILE = 1024  # rows of x processed per grid step (upper bound)


def _mlp_kernel(x_ref, vec_ref, w2_ref, o_ref):
    x = x_ref[...]                         # (BT, 2) f32 — natural input width
    x0 = x[:, 0:1]                         # (BT, 1)
    x1 = x[:, 1:2]                         # (BT, 1)

    w1r0 = vec_ref[0:1, :]                 # (1, 128) fc1 weights for x feature 0
    w1r1 = vec_ref[1:2, :]                 # (1, 128) fc1 weights for x feature 1
    b1 = vec_ref[2:3, :]                   # (1, 128)
    b2 = vec_ref[3:4, :]                   # (1, 128)
    w3 = vec_ref[4:5, :]                   # (1, 128) fc3 weights as a row
    b3 = vec_ref[5:6, 0:1]                 # (1, 1)

    # fc1 + relu: in_dim == 2, so two VPU broadcast-multiply-adds beat the MXU.
    h1 = jnp.maximum(x0 * w1r0 + x1 * w1r1 + b1, 0.0)              # (BT, 128)
    # fc2 + relu: the single MXU matmul of the kernel.
    h2 = jnp.dot(h1, w2_ref[...], preferred_element_type=jnp.float32)
    h2 = jnp.maximum(h2 + b2, 0.0)                                  # (BT, 128)
    # fc3 + sigmoid: out_dim == 1 -> cross-lane reduction (XLU), narrow store.
    z = jnp.sum(h2 * w3, axis=-1, keepdims=True) + b3               # (BT, 1)
    o_ref[...] = jax.nn.sigmoid(z)


def _round_up(a, m):
    return ((a + m - 1) // m) * m


def _pick_batch_tile(n):
    bt = min(MAX_BATCH_TILE, _round_up(max(n, 1), 8))
    if n > 8:
        # Keep the grid at >= 2 steps so a v7x chip can shard the "parallel"
        # axis across both TensorCores (irrelevant but harmless on v5e/v6e).
        bt = min(bt, _round_up((n + 1) // 2, 8))
    return bt


@jax.jit
def discriminator_forward(x, params):
    """x: (N, 2) float32 -> (N, 1) float32, matching the PyTorch module."""
    w1, b1, w2, b2, w3, b3 = params
    n = x.shape[0]
    hid = w2.shape[0]
    assert x.shape[1] == IN_DIM and hid <= LANE

    bt = _pick_batch_tile(n)
    n_pad = _round_up(n, bt)

    x_in = x
    if n_pad != n:  # pad only the batch dim (rows of 2 floats — tiny)
        x_in = jnp.zeros((n_pad, IN_DIM), x.dtype).at[:n].set(x)

    # Pack all six parameters into two small constant slabs.  Zero padding is
    # mathematically inert: padded weight rows/cols and biases are 0, and
    # relu(0) = 0, so padded hidden lanes stay exactly 0.
    vec = jnp.zeros((8, LANE), jnp.float32)
    vec = vec.at[0, :hid].set(w1[:, 0])     # fc1 weights hit by x[:, 0]
    vec = vec.at[1, :hid].set(w1[:, 1])     # fc1 weights hit by x[:, 1]
    vec = vec.at[2, :hid].set(b1)
    vec = vec.at[3, :hid].set(b2)
    vec = vec.at[4, :hid].set(w3[0, :])     # fc3 weights as a row
    vec = vec.at[5, 0].set(b3[0])
    w2p = jnp.zeros((LANE, LANE), jnp.float32).at[:hid, :hid].set(w2.T)

    grid = (n_pad // bt,)

    out = pl.pallas_call(
        _mlp_kernel,
        out_shape=jax.ShapeDtypeStruct((n_pad, OUT_DIM), jnp.float32),
        grid_spec=pltpu.PrefetchScalarGridSpec(
            num_scalar_prefetch=0,
            grid=grid,
            in_specs=[
                # x tile at natural width: last dim == full array dim (2).
                pl.BlockSpec((bt, IN_DIM), lambda i: (i, 0)),
                # constant packed vectors + fc2 weights (fetched once; the
                # pipeline skips re-DMA since the block index never changes).
                pl.BlockSpec((8, LANE), lambda i: (0, 0)),
                pl.BlockSpec((LANE, LANE), lambda i: (0, 0)),
            ],
            # Narrow (BT, 1) output block: only 4 bytes/row of HBM writeback.
            out_specs=pl.BlockSpec((bt, OUT_DIM), lambda i: (i, 0)),
        ),
        compiler_params=pltpu.CompilerParams(
            dimension_semantics=("parallel",),
            vmem_limit_bytes=32 * 1024 * 1024,
        ),
    )(x_in, vec, w2p)

    if n_pad != n:
        out = out[:n]
    return out


def init_params(key, hidden_dim=HIDDEN_DIM):
    """Deterministic init mimicking nn.Linear default (uniform +-1/sqrt(fan_in)).

    Weights kept in PyTorch convention: (out_features, in_features).
    """
    def linear(key, fan_in, fan_out):
        kw, kb = jax.random.split(key)
        bound = 1.0 / jnp.sqrt(float(fan_in))
        w = jax.random.uniform(kw, (fan_out, fan_in), jnp.float32, -bound, bound)
        b = jax.random.uniform(kb, (fan_out,), jnp.float32, -bound, bound)
        return w, b

    k1, k2, k3 = jax.random.split(key, 3)
    w1, b1 = linear(k1, IN_DIM, hidden_dim)
    w2, b2 = linear(k2, hidden_dim, hidden_dim)
    w3, b3 = linear(k3, hidden_dim, OUT_DIM)
    return (w1, b1, w2, b2, w3, b3)


def reference_forward(x, params):
    """Plain-JAX reference of the PyTorch forward, for verification."""
    w1, b1, w2, b2, w3, b3 = params
    h = jax.nn.relu(x @ w1.T + b1)
    h = jax.nn.relu(h @ w2.T + b2)
    return jax.nn.sigmoid(h @ w3.T + b3)


if __name__ == "__main__":
    key = jax.random.PRNGKey(0)
    k_params, k_x = jax.random.split(key)

    params = init_params(k_params, HIDDEN_DIM)
    # Small batch of 2-D points, matching the module's expected input (N, 2).
    x = jax.random.normal(k_x, (32, IN_DIM), jnp.float32)

    out = discriminator_forward(x, params)
    out = jax.block_until_ready(out)

    ref = reference_forward(x, params)
    assert out.shape == (32, 1), out.shape
    assert jnp.allclose(out, ref, atol=1e-5, rtol=1e-5), (
        float(jnp.max(jnp.abs(out - ref)))
    )

    print("KERNEL_OK")
</pallas_src>

<mosaic_0001>
module attributes {stable_mosaic.version = 11 : i64} {
  func.func @_mlp_kernel(%arg0: i32, %arg1: memref<16x2xf32, #tpu.memory_space<vmem>>, %arg2: memref<8x128xf32, #tpu.memory_space<vmem>>, %arg3: memref<128x128xf32, #tpu.memory_space<vmem>>, %arg4: memref<16x1xf32, #tpu.memory_space<vmem>>) attributes {dimension_semantics = [#tpu.dimension_semantics<parallel>], iteration_bounds = array<i64: 2>, scalar_prefetch = 0 : i64, scratch_operands = 0 : i64, tpu.core_type = #tpu.core_type<tc>, window_params = [{transform_indices = @transform_0, window_bounds = array<i64: 16, 2>}, {pipeline_mode = #tpu.pipeline_mode<synchronous>, transform_indices = @transform_1, window_bounds = array<i64: 8, 128>}, {pipeline_mode = #tpu.pipeline_mode<synchronous>, transform_indices = @transform_2, window_bounds = array<i64: 128, 128>}, {transform_indices = @transform_3, window_bounds = array<i64: 16, 1>}]} {
    %c0 = arith.constant 0 : index
    %c0_0 = arith.constant 0 : index
    %0 = vector.load %arg1[%c0, %c0_0] : memref<16x2xf32, #tpu.memory_space<vmem>>, vector<16x2xf32>
    %1 = vector.extract_strided_slice %0 {offsets = [0, 0], sizes = [16, 1], strides = [1, 1]} : vector<16x2xf32> to vector<16x1xf32>
    %2 = vector.extract_strided_slice %0 {offsets = [0, 1], sizes = [16, 1], strides = [1, 1]} : vector<16x2xf32> to vector<16x1xf32>
    %c0_1 = arith.constant 0 : index
    %c0_2 = arith.constant 0 : index
    %3 = vector.load %arg2[%c0_1, %c0_2] : memref<8x128xf32, #tpu.memory_space<vmem>>, vector<1x128xf32>
    %c1 = arith.constant 1 : index
    %c0_3 = arith.constant 0 : index
    %4 = vector.load %arg2[%c1, %c0_3] : memref<8x128xf32, #tpu.memory_space<vmem>>, vector<1x128xf32>
    %c2 = arith.constant 2 : index
    %c0_4 = arith.constant 0 : index
    %5 = vector.load %arg2[%c2, %c0_4] : memref<8x128xf32, #tpu.memory_space<vmem>>, vector<1x128xf32>
    %c3 = arith.constant 3 : index
    %c0_5 = arith.constant 0 : index
    %6 = vector.load %arg2[%c3, %c0_5] : memref<8x128xf32, #tpu.memory_space<vmem>>, vector<1x128xf32>
    %c4 = arith.constant 4 : index
    %c0_6 = arith.constant 0 : index
    %7 = vector.load %arg2[%c4, %c0_6] : memref<8x128xf32, #tpu.memory_space<vmem>>, vector<1x128xf32>
    %c5 = arith.constant 5 : index
    %c0_7 = arith.constant 0 : index
    %8 = vector.load %arg2[%c5, %c0_7] : memref<8x128xf32, #tpu.memory_space<vmem>>, vector<1x1xf32>
    %9 = vector.broadcast %1 : vector<16x1xf32> to vector<16x128xf32>
    %10 = vector.broadcast %3 : vector<1x128xf32> to vector<16x128xf32>
    %11 = arith.mulf %9, %10 : vector<16x128xf32>
    %12 = vector.broadcast %2 : vector<16x1xf32> to vector<16x128xf32>
    %13 = vector.broadcast %4 : vector<1x128xf32> to vector<16x128xf32>
    %14 = arith.mulf %12, %13 : vector<16x128xf32>
    %15 = arith.addf %11, %14 : vector<16x128xf32>
    %16 = vector.broadcast %5 : vector<1x128xf32> to vector<16x128xf32>
    %17 = arith.addf %15, %16 : vector<16x128xf32>
    %cst = arith.constant 0.000000e+00 : f32
    %18 = vector.broadcast %cst : f32 to vector<16x128xf32>
    %19 = arith.maximumf %17, %18 : vector<16x128xf32>
    %c0_8 = arith.constant 0 : index
    %c0_9 = arith.constant 0 : index
    %20 = vector.load %arg3[%c0_8, %c0_9] : memref<128x128xf32, #tpu.memory_space<vmem>>, vector<128x128xf32>
    %cst_10 = arith.constant dense<0.000000e+00> : vector<16x128xf32>
    %21 = tpu.matmul %19, %20, %cst_10 {dimension_numbers = #tpu.dot_dimension_numbers<[1], [0], [0], [1], [0, 0, 1, 1], [], []>} : vector<16x128xf32>, vector<128x128xf32>, vector<16x128xf32> -> vector<16x128xf32>
    %22 = vector.broadcast %6 : vector<1x128xf32> to vector<16x128xf32>
    %23 = arith.addf %21, %22 : vector<16x128xf32>
    %cst_11 = arith.constant 0.000000e+00 : f32
    %24 = vector.broadcast %cst_11 : f32 to vector<16x128xf32>
    %25 = arith.maximumf %23, %24 : vector<16x128xf32>
    %26 = vector.broadcast %7 : vector<1x128xf32> to vector<16x128xf32>
    %27 = arith.mulf %25, %26 : vector<16x128xf32>
    %cst_12 = arith.constant dense<0.000000e+00> : vector<16xf32>
    %28 = vector.multi_reduction <add>, %27, %cst_12 [1] : vector<16x128xf32> to vector<16xf32>
    %29 = vector.shape_cast %28 : vector<16xf32> to vector<16x1xf32>
    %30 = vector.broadcast %8 : vector<1x1xf32> to vector<16x1xf32>
    %31 = arith.addf %29, %30 : vector<16x1xf32>
    %32 = arith.negf %31 : vector<16x1xf32>
    %33 = math.exp %32 : vector<16x1xf32>
    %cst_13 = arith.constant 1.000000e+00 : f32
    %34 = vector.broadcast %cst_13 : f32 to vector<16x1xf32>
    %35 = arith.addf %34, %33 : vector<16x1xf32>
    %36 = arith.divf %34, %35 : vector<16x1xf32>
    %c0_14 = arith.constant 0 : index
    %c0_15 = arith.constant 0 : index
    %37 = vector.load %arg4[%c0_14, %c0_15] : memref<16x1xf32, #tpu.memory_space<vmem>>, vector<16x1xf32>
    tpu.vector_store %arg4[%c0_14, %c0_15], %36 {strides = array<i32>} : memref<16x1xf32, #tpu.memory_space<vmem>>, vector<16x1xf32>,
    return
  }
  func.func @transform_0(%arg0: i32) -> (i32, i32) {
    %c0_i32 = arith.constant 0 : i32
    %c0_i32_0 = arith.constant 0 : i32
    return %arg0, %c0_i32 : i32, i32
  }
  func.func @transform_1(%arg0: i32) -> (i32, i32) {
    %c0_i32 = arith.constant 0 : i32
    %c0_i32_0 = arith.constant 0 : i32
    %c0_i32_1 = arith.constant 0 : i32
    return %c0_i32, %c0_i32_0 : i32, i32
  }
  func.func @transform_2(%arg0: i32) -> (i32, i32) {
    %c0_i32 = arith.constant 0 : i32
    %c0_i32_0 = arith.constant 0 : i32
    %c0_i32_1 = arith.constant 0 : i32
    return %c0_i32, %c0_i32_0 : i32, i32
  }
  func.func @transform_3(%arg0: i32) -> (i32, i32) {
    %c0_i32 = arith.constant 0 : i32
    %c0_i32_0 = arith.constant 0 : i32
    return %arg0, %c0_i32 : i32, i32
  }
}

</mosaic_0001>

<llo_original>
// kernel: discriminator_forward.1
$region0: #{discriminator_forward.1}
  #allocation0 [shape = 'u32[]', space=smem, size = 0x4, offset = 0x4, fixed_abs, tag = 'smem constant byte address 0x4 - core index']
  #allocation1 [shape = 'u32[144,128]{1,0:T(1,128)}', space=vmem, size = 0x12000, scoped, tag = 'internal scratch']
  %s0 = inlined_call_operand.vmem [shape: f32[32,2], index: 0, kind: input, shape index: {}]
  %s1 = inlined_call_operand.vmem [shape: f32[8,128], index: 1, kind: input, shape index: {}]
  %s2 = inlined_call_operand.vmem [shape: f32[128,128], index: 2, kind: input, shape index: {}]
  %s3 = inlined_call_operand.vmem [shape: f32[32,1], index: 3, kind: output, shape index: {}]
  %s4 = sld [smem:[#allocation0]]
  $region45: #{discriminator_forward.1} parent=0
    _
  %s6 = ssub.s32 1, %s4
  %s7 = scalar_select 0, %s6, %s4
  loop: start=0, step=1, limit=4
  $region2: #{discriminator_forward.1} parent=0 // loop_pre_header
    _
  $region3: #{discriminator_forward.1} parent=0 // loop_header
    %s9 = sphi 0, %s13
    %p10 = scmp.ge.s32.totalorder %s9, 4
    %s19 = sphi 0, %s21
    %s22 = sphi 0, %s19
    %s23 = sphi 0, %s22
    %s39 = sphi 0, %s23
    %s43 = sphi 0, %s43
    %s45 = sphi 0, %s43
    %s46 = sphi 0, %s45
    %s60 = sphi 0, %s46
    %s64 = sphi 0, %s64
    %s66 = sphi 0, %s64
    %s67 = sphi 0, %s66
    %s81 = sphi 0, %s67
    %s87 = sphi 0, %s89
    %s90 = sphi 0, %s87
    %s91 = sphi 0, %s90
    %s107 = sphi 0, %s91
  $region4: #{discriminator_forward.1} parent=0 // loop_header_branch
    %12 = sbr.rel (%p10) target = $region8
  $region5: #{discriminator_forward.1} parent=0 // loop_body
    %s14 = ssub.s32 %s9, 1
    %s15 = ssub.s32 %s9, 2
    %s16 = sadd.s32 %s9, 1
    %s17 = ssub.s32 %s9, %s16
    %p18 = scmp.eq.s32.totalorder %s17, 0
    %s20 = sadd.s32 %s19, 1
    %s21 = scalar_select %p18, %s19, %s20
    %p24 = pneg %p18
    %p25 = scmp.eq.s32.totalorder %s9, 1
    %p26 = por %p24, %p25
    %p27 = scmp.ne.s32.totalorder %s19, %s22
    %p28 = scmp.eq.s32.totalorder %s9, 0
    %p29 = por %p27, %p28
    %p30 = scmp.ne.s32.totalorder %s19, %s22
    %p31 = scmp.eq.s32.totalorder %s14, 1
    %p32 = por %p30, %p31
    %p33 = scmp.ne.s32.totalorder %s22, %s23
    %p34 = scmp.eq.s32.totalorder %s14, 0
    %p35 = por %p33, %p34
    %p36 = scmp.ne.s32.totalorder %s22, %s23
    %p37 = scmp.eq.s32.totalorder %s15, 1
    %p38 = por %p36, %p37
    %p40 = scmp.ne.s32.totalorder %s23, %s39
    %p41 = scmp.eq.s32.totalorder %s15, 0
    %p42 = por %p40, %p41
    %s44 = sadd.s32 %s43, 1
    %p47 = scmp.eq.s32.totalorder %s9, 1
    %p48 = scmp.ne.s32.totalorder %s43, %s45
    %p49 = scmp.eq.s32.totalorder %s9, 0
    %p50 = por %p48, %p49
    %p51 = scmp.ne.s32.totalorder %s43, %s45
    %p52 = scmp.eq.s32.totalorder %s14, 1
    %p53 = por %p51, %p52
    %p54 = scmp.ne.s32.totalorder %s45, %s46
    %p55 = scmp.eq.s32.totalorder %s14, 0
    %p56 = por %p54, %p55
    %p57 = scmp.ne.s32.totalorder %s45, %s46
    %p58 = scmp.eq.s32.totalorder %s15, 1
    %p59 = por %p57, %p58
    %p61 = scmp.ne.s32.totalorder %s46, %s60
    %p62 = scmp.eq.s32.totalorder %s15, 0
    %p63 = por %p61, %p62
    %s65 = sadd.s32 %s64, 1
    %p68 = scmp.eq.s32.totalorder %s9, 1
    %p69 = scmp.ne.s32.totalorder %s64, %s66
    %p70 = scmp.eq.s32.totalorder %s9, 0
    %p71 = por %p69, %p70
    %p72 = scmp.ne.s32.totalorder %s64, %s66
    %p73 = scmp.eq.s32.totalorder %s14, 1
    %p74 = por %p72, %p73
    %p75 = scmp.ne.s32.totalorder %s66, %s67
    %p76 = scmp.eq.s32.totalorder %s14, 0
    %p77 = por %p75, %p76
    %p78 = scmp.ne.s32.totalorder %s66, %s67
    %p79 = scmp.eq.s32.totalorder %s15, 1
    %p80 = por %p78, %p79
    %p82 = scmp.ne.s32.totalorder %s67, %s81
    %p83 = scmp.eq.s32.totalorder %s15, 0
    %p84 = por %p82, %p83
    %s85 = ssub.s32 %s9, %s16
    %p86 = scmp.eq.s32.totalorder %s85, 0
    %s88 = sadd.s32 %s87, 1
    %s89 = scalar_select %p86, %s87, %s88
    %p92 = pneg %p86
    %p93 = scmp.eq.s32.totalorder %s9, 1
    %p94 = por %p92, %p93
    %p95 = scmp.ne.s32.totalorder %s87, %s90
    %p96 = scmp.eq.s32.totalorder %s9, 0
    %p97 = por %p95, %p96
    %p98 = scmp.ne.s32.totalorder %s87, %s90
    %p99 = scmp.eq.s32.totalorder %s14, 1
    %p100 = por %p98, %p99
    %p101 = scmp.ne.s32.totalorder %s90, %s91
    %p102 = scmp.eq.s32.totalorder %s14, 0
    %p103 = por %p101, %p102
    %p104 = scmp.ne.s32.totalorder %s90, %s91
    %p105 = scmp.eq.s32.totalorder %s15, 1
    %p106 = por %p104, %p105
    %p108 = scmp.ne.s32.totalorder %s91, %s107
    %p109 = scmp.eq.s32.totalorder %s15, 0
    %p110 = por %p108, %p109
    %p111 = scmp.le.s32.totalorder 1, %s9
    %p112 = scmp.lt.s32.totalorder %s9, 3
    %p113 = pnand %p111, %p112
    %p114 = pneg %p113
    // Predicated region
    $region9: #{discriminator_forward.1} parent=5 // pred_check
      _
    $region10: #{discriminator_forward.1} parent=5 // pred_check_branch
      %116 = sbr.rel (%p113) target = $region12
    $region11: #{discriminator_forward.1} parent=5 // pred_region
      %s117 = ssub.s32 %s9, 1
      // Predicated region
      $region13: #{discriminator_forward.1} parent=11 // pred_check
        %p118 = pneg %p56
      $region14: #{discriminator_forward.1} parent=11 // pred_check_branch
        %120 = sbr.rel (%p118) target = $region16
      $region15: #{discriminator_forward.1} parent=11 // pred_region
        _
      $region16: #{discriminator_forward.1} parent=11 // pred_fallthru
        _
      // Predicated region
      $region17: #{discriminator_forward.1} parent=11 // pred_check
        %p121 = pneg %p77
      $region18: #{discriminator_forward.1} parent=11 // pred_check_branch
        %123 = sbr.rel (%p121) target = $region20
      $region19: #{discriminator_forward.1} parent=11 // pred_region
        _
      $region20: #{discriminator_forward.1} parent=11 // pred_fallthru
        _
    $region12: #{discriminator_forward.1} parent=5 // pred_fallthru
      _
    %p124 = scmp.lt.s32.totalorder %s9, 2
    // Predicated region
    $region21: #{discriminator_forward.1} parent=5 // pred_check
      %p125 = pneg %p124
    $region22: #{discriminator_forward.1} parent=5 // pred_check_branch
      %127 = sbr.rel (%p125) target = $region24
    $region23: #{discriminator_forward.1} parent=5 // pred_region
      // Predicated region
      $region25: #{discriminator_forward.1} parent=23 // pred_check
        %p128 = pneg %p29
      $region26: #{discriminator_forward.1} parent=23 // pred_check_branch
        %130 = sbr.rel (%p128) target = $region28
      $region27: #{discriminator_forward.1} parent=23 // pred_region
        %s131 = smul.u32 2, %s9
        %p132 = scmp.lt.s32.totalorder %s131, 3
        %s133 = scalar_select %p132, %s131, 3
        %s134 = smul.addr %s133, 8
        %s135 = scalar_lea.vmem %s0, %s134
        %s136 = smul.u32 2, %s9
      $region28: #{discriminator_forward.1} parent=23 // pred_fallthru
        _
    $region24: #{discriminator_forward.1} parent=5 // pred_fallthru
      _
    %p137 = scmp.le.s32.totalorder 1, %s9
    %p138 = scmp.lt.s32.totalorder %s9, 3
    %p139 = pnand %p137, %p138
    %p140 = pneg %p139
    // Predicated region
    $region29: #{discriminator_forward.1} parent=5 // pred_check
      _
    $region30: #{discriminator_forward.1} parent=5 // pred_check_branch
      %142 = sbr.rel (%p139) target = $region32
    $region31: #{discriminator_forward.1} parent=5 // pred_region
      %s143 = ssub.s32 %s9, 1
      %s144 = smul.u32 2, %s14
      %p145 = scmp.lt.s32.totalorder %s144, 3
      %s146 = scalar_select %p145, %s144, 3
      %s147 = smul.addr %s146, 8
      %s148 = scalar_lea.vmem %s0, %s147
      %p149 = pneg %p35
      %p150 = pneg %p32
      %p151 = pneg %p56
      %p152 = pneg %p53
      %p153 = pneg %p77
      %p154 = pneg %p74
      %p155 = pneg %p103
      %p156 = pneg %p100
      %s157 = smul.u32 2, %s14
      %p158 = scmp.lt.s32.totalorder %s157, 3
      %s159 = scalar_select %p158, %s157, 3
      %s160 = smul.addr %s159, 8
      %s161 = scalar_lea.vmem %s3, %s160
      %s162 = smul.u32 2, %s14
      %p163 = scmp.lt.s32.totalorder %s162, 3
      %s164 = scalar_select %p163, %s162, 3
      %s165 = smul.addr %s164, 8
      %s166 = scalar_lea.vmem %s0, %s165
      %s167 = smul.u32 2, %s14
      %s168 = smul.u32 2, %s14
      %p169 = scmp.lt.s32.totalorder %s168, 3
      %s170 = scalar_select %p169, %s168, 3
      %s171 = smul.addr %s170, 8
      %s172 = scalar_lea.vmem %s3, %s171
      %s173 = smul.u32 2, %s14
      %v174 = vld [vmem:[%s166] sm:$0xff]
      %v175 = vld [vmem:[%s166 + $0x8] sm:$0xff]
      %v176 = vld [vmem:[%s1] sm:$0x1]
      %v177 = vld [vmem:[%s1 + $0x1] sm:$0x1]
      %v178 = vld [vmem:[%s1 + $0x2] sm:$0x1]
      %v179 = vld [vmem:[%s1 + $0x3] sm:$0x1]
      %v180 = vld [vmem:[%s1 + $0x4] sm:$0x1]
      %v181 = vld [vmem:[%s1 + $0x5] sm:$0x1]
      %183 = vset.pattern.permute.xlu0 0
      %184 = vperm.xlu0 %183, %v174
      %v185 = vpop.permute.xlu0 %184
      %188 = vset.pattern.permute.xlu0 0
      %189 = vperm.xlu0 %188, %v175
      %v190 = vpop.permute.xlu0 %189
      %v192 = vlaneseq
      %v193 = vshrl.u32 %v192, 7
      %v194 = vsub.s32 0, %v193
      %v195 = vrot.slane %v176, %v194
      %v196 = vmul.f32 %v185, %v195
      %v197 = vmul.f32 %v190, %v195
      %198 = vset.pattern.permute.xlu0 1
      %199 = vperm.xlu0 %198, %v174
      %v200 = vpop.permute.xlu0 %199
      %202 = vset.pattern.permute.xlu0 1
      %203 = vperm.xlu0 %202, %v175
      %v204 = vpop.permute.xlu0 %203
      %v206 = vlaneseq
      %v207 = vshrl.u32 %v206, 7
      %v208 = vsub.s32 0, %v207
      %v209 = vrot.slane %v177, %v208
      %v210 = vmul.f32 %v200, %v209
      %v211 = vmul.f32 %v204, %v209
      %v212 = vadd.f32 %v196, %v210
      %v213 = vadd.f32 %v197, %v211
      %v214 = vlaneseq
      %v215 = vshrl.u32 %v214, 7
      %v216 = vsub.s32 0, %v215
      %v217 = vrot.slane %v178, %v216
      %v218 = vadd.f32 %v212, %v217
      %v219 = vadd.f32 %v213, %v217
      %v220 = vmax.f32 %v218, 0.0
      %v221 = vmax.f32 %v219, 0.0
      %v222 = vld [vmem:[%s2] sm:$0xff]
      %v223 = vld [vmem:[%s2 + $0x8] sm:$0xff]
      %v224 = vld [vmem:[%s2 + $0x10] sm:$0xff]
      %v225 = vld [vmem:[%s2 + $0x18] sm:$0xff]
      %v226 = vld [vmem:[%s2 + $0x20] sm:$0xff]
      %v227 = vld [vmem:[%s2 + $0x28] sm:$0xff]
      %v228 = vld [vmem:[%s2 + $0x30] sm:$0xff]
      %v229 = vld [vmem:[%s2 + $0x38] sm:$0xff]
      %v230 = vld [vmem:[%s2 + $0x40] sm:$0xff]
      %v231 = vld [vmem:[%s2 + $0x48] sm:$0xff]
      %v232 = vld [vmem:[%s2 + $0x50] sm:$0xff]
      %v233 = vld [vmem:[%s2 + $0x58] sm:$0xff]
      %v234 = vld [vmem:[%s2 + $0x60] sm:$0xff]
      %v235 = vld [vmem:[%s2 + $0x68] sm:$0xff]
      %v236 = vld [vmem:[%s2 + $0x70] sm:$0xff]
      %v237 = vld [vmem:[%s2 + $0x78] sm:$0xff]
      %v238 = vlaneseq
      %v239 = vshrl.u32 %v238, 7
      %v240 = vsub.s32 0, %v239
      %v241 = vrot.slane %v179, %v240
      %242 = vmatprep.subr.mxu0 0.0
      %243 = vmatpush1.msra.mxu0 %v222
      %244 = vmatprep.subr.mxu0 0.0
      %245 = vmatpush1.msra.mxu0 %v223
      %246 = vmatprep.subr.mxu0 0.0
      %247 = vmatpush1.msra.mxu0 %v224
      %248 = vmatprep.subr.mxu0 0.0
      %249 = vmatpush1.msra.mxu0 %v225
      %250 = vmatprep.subr.mxu0 0.0
      %251 = vmatpush1.msra.mxu0 %v226
      %252 = vmatprep.subr.mxu0 0.0
      %253 = vmatpush1.msra.mxu0 %v227
      %254 = vmatprep.subr.mxu0 0.0
      %255 = vmatpush1.msra.mxu0 %v228
      %256 = vmatprep.subr.mxu0 0.0
      %257 = vmatpush1.msra.mxu0 %v229
      %258 = vmatprep.subr.mxu0 0.0
      %259 = vmatpush1.msra.mxu0 %v230
      %260 = vmatprep.subr.mxu0 0.0
      %261 = vmatpush1.msra.mxu0 %v231
      %262 = vmatprep.subr.mxu0 0.0
      %263 = vmatpush1.msra.mxu0 %v232
      %264 = vmatprep.subr.mxu0 0.0
      %265 = vmatpush1.msra.mxu0 %v233
      %266 = vmatprep.subr.mxu0 0.0
      %267 = vmatpush1.msra.mxu0 %v234
      %268 = vmatprep.subr.mxu0 0.0
      %269 = vmatpush1.msra.mxu0 %v235
      %270 = vmatprep.subr.mxu0 0.0
      %271 = vmatpush1.msra.mxu0 %v236
      %272 = vmatprep.subr.mxu0 0.0
      %273 = vmatpush1.msra.mxu0 %v237
      %274 = vmatprep.subr.mxu0 0.0
      %275 = vmatpush1.msra.mxu0 0.0
      %276 = vmatprep.subr.mxu0 0.0
      %277 = vmatpush1.msra.mxu0 0.0
      %278 = vmatprep.subr.mxu0 0.0
      %279 = vmatpush1.msra.mxu0 0.0
      %280 = vmatprep.subr.mxu0 0.0
      %281 = vmatpush1.msra.mxu0 0.0
      %282 = vmatprep.subr.mxu0 0.0
      %283 = vmatpush1.msra.mxu0 0.0
      %284 = vmatprep.subr.mxu0 0.0
      %285 = vmatpush1.msra.mxu0 0.0
      %286 = vmatprep.subr.mxu0 0.0
      %287 = vmatpush1.msra.mxu0 0.0
      %288 = vmatprep.subr.mxu0 0.0
      %289 = vmatpush1.msra.mxu0 0.0
      %290 = vmatprep.subr.mxu0 0.0
      %291 = vmatpush1.msra.mxu0 0.0
      %292 = vmatprep.subr.mxu0 0.0
      %293 = vmatpush1.msra.mxu0 0.0
      %294 = vmatprep.subr.mxu0 0.0
      %295 = vmatpush1.msra.mxu0 0.0
      %296 = vmatprep.subr.mxu0 0.0
      %297 = vmatpush1.msra.mxu0 0.0
      %298 = vmatprep.subr.mxu0 0.0
      %299 = vmatpush1.msra.mxu0 0.0
      %300 = vmatprep.subr.mxu0 0.0
      %301 = vmatpush1.msra.mxu0 0.0
      %302 = vmatprep.subr.mxu0 0.0
      %303 = vmatpush1.msra.mxu0 0.0
      %304 = vmatprep.subr.mxu0 0.0
      %305 = vmatpush1.msra.mxu0 0.0
      %306 = vmatprep.mubr.f32.mxu0 0.0
      %307 = vmatmul.mubr.f32.gmra.mrb[0].mxu0 %v220
      %v308 = vpop.f32.mrb[0].mxu0
      %v309 = vadd.f32 %v241, %v308
      %v310 = vpop.f32.mrb[0].mxu0
      %311 = vmatprep.mubr.f32.mxu0 0.0
      %312 = vmatmul.mubr.f32.gmra.mrb[0].mxu0 %v221
      %v313 = vpop.f32.mrb[0].mxu0
      %v314 = vadd.f32 %v241, %v313
      %v315 = vpop.f32.mrb[0].mxu0
      %316 = vdwg.mxu0
      %v317 = vmax.f32 %v309, 0.0
      %v318 = vmax.f32 %v314, 0.0
      %v319 = vlaneseq
      %v320 = vshrl.u32 %v319, 7
      %v321 = vsub.s32 0, %v320
      %v322 = vrot.slane %v180, %v321
      %v323 = vmul.f32 %v317, %v322
      %v324 = vmul.f32 %v318, %v322
      %325 = vadd.xlane.f32.xlu0 %v323
      %v326 = vpop.xlane.xlu0 %325
      %327 = vadd.xlane.f32.xlu0 %v324
      %v328 = vpop.xlane.xlu0 %327
      %v329 = vlaneseq
      %v330 = vshrl.u32 %v329, 7
      %v331 = vsub.s32 0, %v330
      %v332 = vrot.slane %v181, %v331
      %v333 = vadd.f32 %v326, %v332
      %v334 = vadd.f32 %v328, %v332
      %v335 = vxor.u32 %v333, 2147483648
      %v336 = vxor.u32 %v334, 2147483648
      %v337 = vmul.f32 %v335, 1.442695
      %v338 = vpow.pop %v337
      %v339 = vmul.f32 %v336, 1.442695
      %v340 = vpow.pop %v339
      %v341 = vadd.f32 %v338, 1.0
      %v342 = vadd.f32 %v340, 1.0
      %v343 = vrcp.pop %v341
      %v344 = vmul.f32 1.0, %v343
      %v345 = vrcp.pop %v342
      %v346 = vmul.f32 1.0, %v345
      %vm347 = vcmask 7168
      %348 = vst.msk [vmem:[%s172] sm:$0xff] %vm347, %v344
      %349 = vst.msk [vmem:[%s172 + $0x8] sm:$0xff] %vm347, %v346
      %s350 = smul.u32 2, %s14
      %p351 = scmp.lt.s32.totalorder %s350, 3
      %s352 = scalar_select %p351, %s350, 3
      %s353 = smul.addr %s352, 8
      %s354 = scalar_lea.vmem %s3, %s353
      // Predicated region
      $region33: #{discriminator_forward.1} parent=31 // pred_check
        %p355 = pneg %p100
      $region34: #{discriminator_forward.1} parent=31 // pred_check_branch
        %357 = sbr.rel (%p355) target = $region36
      $region35: #{discriminator_forward.1} parent=31 // pred_region
        %s358 = smul.u32 2, %s14
      $region36: #{discriminator_forward.1} parent=31 // pred_fallthru
        _
    $region32: #{discriminator_forward.1} parent=5 // pred_fallthru
      _
    %p359 = scmp.le.s32.totalorder 2, %s9
    // Predicated region
    $region37: #{discriminator_forward.1} parent=5 // pred_check
      %p360 = pneg %p359
    $region38: #{discriminator_forward.1} parent=5 // pred_check_branch
      %362 = sbr.rel (%p360) target = $region40
    $region39: #{discriminator_forward.1} parent=5 // pred_region
      %s363 = ssub.s32 %s9, 2
      // Predicated region
      $region41: #{discriminator_forward.1} parent=39 // pred_check
        %p364 = pneg %p106
      $region42: #{discriminator_forward.1} parent=39 // pred_check_branch
        %366 = sbr.rel (%p364) target = $region44
      $region43: #{discriminator_forward.1} parent=39 // pred_region
        %s367 = smul.u32 2, %s15
        %p368 = scmp.lt.s32.totalorder %s367, 3
        %s369 = scalar_select %p368, %s367, 3
        %s370 = smul.addr %s369, 8
        %s371 = scalar_lea.vmem %s3, %s370
      $region44: #{discriminator_forward.1} parent=39 // pred_fallthru
        _
    $region40: #{discriminator_forward.1} parent=5 // pred_fallthru
      _
  $region6: #{discriminator_forward.1} parent=0 // loop_footer
    %s13 = sadd.s32 1, %s9
  $region7: #{discriminator_forward.1} parent=0 // loop_footer_branch
    %8 = sbr.rel target = $region3
  $region8: #{discriminator_forward.1} parent=0 // loop_exit
    _

</llo_original>
